<compile_context>
chip_gen: v5e
topology: v5e:2x2
jax: 0.10.0
libtpu: 0.0.40
codegen_flags: <defaults>
</compile_context>

<pallas_src>
import functools
import math

import jax
import jax.numpy as jnp
from jax.experimental import pallas as pl
from jax.experimental.pallas import tpu as pltpu

_LANES = 128
_SUBLANES = 8
_TARGET_BLOCK_BYTES = 512 * 1024      # per-output block size target (all TPU gens)
_TSTEP_STREAM = 0x2545F491            # distinct PRNG stream id for the timestep draw
_MASK_23 = (1 << 23) - 1
_INV_2_23 = float(1.0 / (1 << 23))
_TWO_PI = float(2.0 * math.pi)


def _round_up(x, m):
    return (x + m - 1) // m * m


def _sublane_granule(dtype):
    """Row granule that keeps stores unmasked: 8 (f32), 16 (bf16), 32 (int8)."""
    itemsize = jnp.dtype(dtype).itemsize
    return _SUBLANES * max(1, 4 // itemsize)


def _largest_aligned_divisor(n, cap, granule):
    """Largest divisor of n that is a multiple of `granule` and <= cap."""
    best = granule
    d = granule
    cap = min(cap, n)
    while d <= cap:
        if n % d == 0:
            best = d
        d += granule
    return best


# ----------------------------- in-kernel math ------------------------------

def _u01_from_bits(bits_i32, *, open_low=False):
    """Uniform f32 on a 2^-23 grid from int32 random bits.

    Uses the low 23 bits (always non-negative after the mask) so only the
    universally supported s32->f32 convert is needed.  With open_low the value
    is strictly inside (0, 1): safe for log().
    """
    m = jnp.bitwise_and(bits_i32, _MASK_23).astype(jnp.float32)   # exact in f32
    if open_low:
        m = m + 0.5
    return m * _INV_2_23


def _box_muller_from_bits(bits1, bits2):
    """One (u1, u2) draw -> two independent standard normals (cos/sin branch)."""
    u1 = _u01_from_bits(bits1, open_low=True)
    u2 = _u01_from_bits(bits2)
    r = jnp.sqrt(-2.0 * jnp.log(u1))
    theta = _TWO_PI * u2
    return r * jnp.cos(theta), r * jnp.sin(theta)


def _timesteps_from_bits(bits_i32, num_steps):
    u = _u01_from_bits(bits_i32)                         # [0, 1)
    t = jnp.floor(u * float(num_steps)).astype(jnp.int32)
    return jnp.minimum(t, num_steps - 1)                 # guard f32 top edge


def _hw_random_bits_i32(shape):
    """Raw int32 bits from the TPU hardware PRNG (TPU path only)."""
    bits = pltpu.prng_random_bits(shape)
    if bits.dtype != jnp.int32:
        bits = pltpu.bitcast(bits, jnp.int32)
    return bits


# -------------------------------- kernels ----------------------------------

def _noise_kernel_tpu(seed_ref, dnoise_ref, vnoise_ref, tstep_ref, *, num_steps):
    # Timesteps: fixed (seed-only) stream -> every tile computes the identical
    # values and writes its own output block; race-free under "parallel".
    pltpu.prng_seed(seed_ref[0], jnp.int32(_TSTEP_STREAM))
    tbits = _hw_random_bits_i32(tstep_ref.shape)
    tstep_ref[...] = _timesteps_from_bits(tbits, num_steps)

    # Gaussian noise: per-tile stream mixed from (seed, tile_id + 1).
    pltpu.prng_seed(seed_ref[0], pl.program_id(0) + 1)
    shape = dnoise_ref.shape
    b1 = _hw_random_bits_i32(shape)
    b2 = _hw_random_bits_i32(shape)
    z_cos, z_sin = _box_muller_from_bits(b1, b2)
    dnoise_ref[...] = z_cos.astype(dnoise_ref.dtype)
    vnoise_ref[...] = z_sin.astype(vnoise_ref.dtype)


def _noise_kernel_portable(b1_ref, b2_ref, tbits_ref, dnoise_ref, vnoise_ref,
                           tstep_ref, *, num_steps):
    # Fallback for non-TPU backends / interpret mode: random bits are produced
    # outside the kernel (the TPU hardware PRNG has no CPU lowering).
    tstep_ref[...] = _timesteps_from_bits(tbits_ref[...], num_steps)
    z_cos, z_sin = _box_muller_from_bits(b1_ref[...], b2_ref[...])
    dnoise_ref[...] = z_cos.astype(dnoise_ref.dtype)
    vnoise_ref[...] = z_sin.astype(vnoise_ref.dtype)


# -------------------------------- wrapper -----------------------------------

def noise_generator_forward(
    input, label, *, height, width, channels, num_diffusion_steps, seed=0
):
    if input.ndim != 4:
        raise ValueError(f"Samples ndim should be 4. Got {input.ndim}")
    batch_size = input.shape[0]
    noise_dtype = input.dtype

    granule = _sublane_granule(noise_dtype)
    n_elems = batch_size * channels * height * width
    n_padded = _round_up(n_elems, granule * _LANES)   # usually == n_elems for DiT
    rows = n_padded // _LANES                         # multiple of `granule`

    itemsize = jnp.dtype(noise_dtype).itemsize
    target_rows = max(
        granule, (_TARGET_BLOCK_BYTES // (_LANES * itemsize)) // granule * granule
    )
    row_tile = _largest_aligned_divisor(rows, target_rows, granule)
    if rows // row_tile == 1 and rows >= 2 * granule:
        # Guarantee >= 2 parallel tiles so both v7x TensorCores get work.
        row_tile = _largest_aligned_divisor(rows, rows // 2, granule)
    n_tiles = rows // row_tile

    bt = _round_up(batch_size, _SUBLANES)             # timestep rows (int32)

    out_shape = (
        jax.ShapeDtypeStruct((rows, _LANES), noise_dtype),        # diffusion noise
        jax.ShapeDtypeStruct((rows, _LANES), noise_dtype),        # vae noise
        jax.ShapeDtypeStruct((n_tiles * bt, _LANES), jnp.int32),  # timesteps (per-tile copies)
    )
    noise_spec = pl.BlockSpec((row_tile, _LANES), lambda i: (i, 0))
    tstep_spec = pl.BlockSpec((bt, _LANES), lambda i: (i, 0))
    cparams = pltpu.CompilerParams(dimension_semantics=("parallel",))

    if jax.default_backend() == "tpu":
        seed_arr = jnp.asarray([seed], dtype=jnp.int32)
        dnoise2d, vnoise2d, tstep2d = pl.pallas_call(
            functools.partial(_noise_kernel_tpu, num_steps=num_diffusion_steps),
            out_shape=out_shape,
            grid=(n_tiles,),
            in_specs=[pl.BlockSpec(memory_space=pltpu.MemorySpace.SMEM)],
            out_specs=(noise_spec, noise_spec, tstep_spec),
            compiler_params=cparams,
        )(seed_arr)
    else:
        # Portable path (CPU / interpret-mode checking): bits generated outside.
        key = jax.random.PRNGKey(seed)
        k1, k2, k3 = jax.random.split(key, 3)
        b1 = jax.lax.bitcast_convert_type(
            jax.random.bits(k1, (rows, _LANES), dtype=jnp.uint32), jnp.int32)
        b2 = jax.lax.bitcast_convert_type(
            jax.random.bits(k2, (rows, _LANES), dtype=jnp.uint32), jnp.int32)
        tbits = jax.lax.bitcast_convert_type(
            jax.random.bits(k3, (bt, _LANES), dtype=jnp.uint32), jnp.int32)
        dnoise2d, vnoise2d, tstep2d = pl.pallas_call(
            functools.partial(_noise_kernel_portable, num_steps=num_diffusion_steps),
            out_shape=out_shape,
            grid=(n_tiles,),
            in_specs=[
                pl.BlockSpec((row_tile, _LANES), lambda i: (i, 0)),
                pl.BlockSpec((row_tile, _LANES), lambda i: (i, 0)),
                pl.BlockSpec((bt, _LANES), lambda i: (0, 0)),
            ],
            out_specs=(noise_spec, noise_spec, tstep_spec),
            compiler_params=cparams,
        )(b1, b2, tbits)

    def _to_nchw(flat2d):
        flat = flat2d.reshape(-1)                      # free: contiguous row-major
        if n_padded != n_elems:
            flat = flat[:n_elems]                      # rare: only if padding was needed
        return flat.reshape(batch_size, channels, height, width)

    diffusion_noise = _to_nchw(dnoise2d)
    vae_noise = _to_nchw(vnoise2d)
    timestep = tstep2d[:batch_size, 0].astype(label.dtype)

    return {
        "input": input,
        "label": label,
        "diffusion_noise": diffusion_noise,
        "timestep": timestep,
        "vae_noise": vae_noise,
    }


if __name__ == "__main__":
    # Small shapes consistent with the module's forward: (B, C, H, W) latents.
    B, C, H, W = 2, 4, 16, 16
    NUM_DIFFUSION_STEPS = 1000

    key = jax.random.PRNGKey(0)
    k_in, k_lbl = jax.random.split(key)
    x = jax.random.normal(k_in, (B, C, H, W), dtype=jnp.float32)
    label = jax.random.randint(k_lbl, (B,), 0, 10, dtype=jnp.int32)

    out = noise_generator_forward(
        x,
        label,
        height=H,
        width=W,
        channels=C,
        num_diffusion_steps=NUM_DIFFUSION_STEPS,
        seed=0,
    )
    jax.block_until_ready(out)

    # Shape / dtype / range sanity checks.
    assert out["input"].shape == (B, C, H, W)
    assert out["label"].shape == (B,)
    assert out["diffusion_noise"].shape == (B, C, H, W)
    assert out["vae_noise"].shape == (B, C, H, W)
    assert out["timestep"].shape == (B,)
    assert out["diffusion_noise"].dtype == x.dtype
    assert out["vae_noise"].dtype == x.dtype
    assert out["timestep"].dtype == label.dtype
    assert bool(jnp.all(out["timestep"] >= 0)) and bool(
        jnp.all(out["timestep"] < NUM_DIFFUSION_STEPS)
    )
    assert bool(jnp.all(jnp.isfinite(out["diffusion_noise"])))
    assert bool(jnp.all(jnp.isfinite(out["vae_noise"])))

    # Loose distributional checks (2048 samples each: ~N(0,1)).
    dn = out["diffusion_noise"].astype(jnp.float32)
    vn = out["vae_noise"].astype(jnp.float32)
    assert abs(float(jnp.mean(dn))) < 0.25 and abs(float(jnp.std(dn)) - 1.0) < 0.25
    assert abs(float(jnp.mean(vn))) < 0.25 and abs(float(jnp.std(vn)) - 1.0) < 0.25
    # The two noise tensors must be distinct draws.
    assert bool(jnp.any(dn != vn))

    print("KERNEL_OK")
</pallas_src>

<mosaic_0001>
module attributes {stable_mosaic.version = 11 : i64} {
  func.func @_noise_kernel_portable(%arg0: i32, %arg1: memref<8x128xi32, #tpu.memory_space<vmem>>, %arg2: memref<8x128xi32, #tpu.memory_space<vmem>>, %arg3: memref<8x128xi32, #tpu.memory_space<vmem>>, %arg4: memref<8x128xf32, #tpu.memory_space<vmem>>, %arg5: memref<8x128xf32, #tpu.memory_space<vmem>>, %arg6: memref<8x128xi32, #tpu.memory_space<vmem>>) attributes {dimension_semantics = [#tpu.dimension_semantics<parallel>], iteration_bounds = array<i64: 2>, scalar_prefetch = 0 : i64, scratch_operands = 0 : i64, tpu.core_type = #tpu.core_type<tc>, window_params = [{transform_indices = @transform_0, window_bounds = array<i64: 8, 128>}, {transform_indices = @transform_1, window_bounds = array<i64: 8, 128>}, {pipeline_mode = #tpu.pipeline_mode<synchronous>, transform_indices = @transform_2, window_bounds = array<i64: 8, 128>}, {transform_indices = @transform_3, window_bounds = array<i64: 8, 128>}, {transform_indices = @transform_4, window_bounds = array<i64: 8, 128>}, {transform_indices = @transform_5, window_bounds = array<i64: 8, 128>}]} {
    %c0 = arith.constant 0 : index
    %c0_0 = arith.constant 0 : index
    %0 = vector.load %arg3[%c0, %c0_0] : memref<8x128xi32, #tpu.memory_space<vmem>>, vector<8x128xi32>
    %c8388607_i32 = arith.constant 8388607 : i32
    %1 = vector.broadcast %c8388607_i32 : i32 to vector<8x128xi32>
    %2 = arith.andi %0, %1 : vector<8x128xi32>
    %3 = arith.sitofp %2 : vector<8x128xi32> to vector<8x128xf32>
    %cst = arith.constant 1.1920929E-7 : f32
    %4 = vector.broadcast %cst : f32 to vector<8x128xf32>
    %5 = arith.mulf %3, %4 : vector<8x128xf32>
    %cst_1 = arith.constant 1.000000e+03 : f32
    %6 = vector.broadcast %cst_1 : f32 to vector<8x128xf32>
    %7 = arith.mulf %5, %6 : vector<8x128xf32>
    %8 = math.floor %7 : vector<8x128xf32>
    %9 = arith.fptosi %8 : vector<8x128xf32> to vector<8x128xi32>
    %c999_i32 = arith.constant 999 : i32
    %10 = vector.broadcast %c999_i32 : i32 to vector<8x128xi32>
    %11 = arith.minsi %9, %10 : vector<8x128xi32>
    %c0_2 = arith.constant 0 : index
    %c0_3 = arith.constant 0 : index
    %12 = vector.load %arg6[%c0_2, %c0_3] : memref<8x128xi32, #tpu.memory_space<vmem>>, vector<8x128xi32>
    tpu.vector_store %arg6[%c0_2, %c0_3], %11 {strides = array<i32>} : memref<8x128xi32, #tpu.memory_space<vmem>>, vector<8x128xi32>,
    %c0_4 = arith.constant 0 : index
    %c0_5 = arith.constant 0 : index
    %13 = vector.load %arg1[%c0_4, %c0_5] : memref<8x128xi32, #tpu.memory_space<vmem>>, vector<8x128xi32>
    %c0_6 = arith.constant 0 : index
    %c0_7 = arith.constant 0 : index
    %14 = vector.load %arg2[%c0_6, %c0_7] : memref<8x128xi32, #tpu.memory_space<vmem>>, vector<8x128xi32>
    %c8388607_i32_8 = arith.constant 8388607 : i32
    %15 = vector.broadcast %c8388607_i32_8 : i32 to vector<8x128xi32>
    %16 = arith.andi %13, %15 : vector<8x128xi32>
    %17 = arith.sitofp %16 : vector<8x128xi32> to vector<8x128xf32>
    %cst_9 = arith.constant 5.000000e-01 : f32
    %18 = vector.broadcast %cst_9 : f32 to vector<8x128xf32>
    %19 = arith.addf %17, %18 : vector<8x128xf32>
    %cst_10 = arith.constant 1.1920929E-7 : f32
    %20 = vector.broadcast %cst_10 : f32 to vector<8x128xf32>
    %21 = arith.mulf %19, %20 : vector<8x128xf32>
    %c8388607_i32_11 = arith.constant 8388607 : i32
    %22 = vector.broadcast %c8388607_i32_11 : i32 to vector<8x128xi32>
    %23 = arith.andi %14, %22 : vector<8x128xi32>
    %24 = arith.sitofp %23 : vector<8x128xi32> to vector<8x128xf32>
    %cst_12 = arith.constant 1.1920929E-7 : f32
    %25 = vector.broadcast %cst_12 : f32 to vector<8x128xf32>
    %26 = arith.mulf %24, %25 : vector<8x128xf32>
    %27 = math.log %21 : vector<8x128xf32>
    %cst_13 = arith.constant -2.000000e+00 : f32
    %28 = vector.broadcast %cst_13 : f32 to vector<8x128xf32>
    %29 = arith.mulf %28, %27 : vector<8x128xf32>
    %30 = math.sqrt %29 : vector<8x128xf32>
    %cst_14 = arith.constant 6.28318548 : f32
    %31 = vector.broadcast %cst_14 : f32 to vector<8x128xf32>
    %32 = arith.mulf %31, %26 : vector<8x128xf32>
    %33 = math.cos %32 : vector<8x128xf32>
    %34 = arith.mulf %30, %33 : vector<8x128xf32>
    %35 = math.sin %32 : vector<8x128xf32>
    %36 = arith.mulf %30, %35 : vector<8x128xf32>
    %c0_15 = arith.constant 0 : index
    %c0_16 = arith.constant 0 : index
    %37 = vector.load %arg4[%c0_15, %c0_16] : memref<8x128xf32, #tpu.memory_space<vmem>>, vector<8x128xf32>
    tpu.vector_store %arg4[%c0_15, %c0_16], %34 {strides = array<i32>} : memref<8x128xf32, #tpu.memory_space<vmem>>, vector<8x128xf32>,
    %c0_17 = arith.constant 0 : index
    %c0_18 = arith.constant 0 : index
    %38 = vector.load %arg5[%c0_17, %c0_18] : memref<8x128xf32, #tpu.memory_space<vmem>>, vector<8x128xf32>
    tpu.vector_store %arg5[%c0_17, %c0_18], %36 {strides = array<i32>} : memref<8x128xf32, #tpu.memory_space<vmem>>, vector<8x128xf32>,
    return
  }
  func.func @transform_0(%arg0: i32) -> (i32, i32) {
    %c0_i32 = arith.constant 0 : i32
    %c0_i32_0 = arith.constant 0 : i32
    return %arg0, %c0_i32 : i32, i32
  }
  func.func @transform_1(%arg0: i32) -> (i32, i32) {
    %c0_i32 = arith.constant 0 : i32
    %c0_i32_0 = arith.constant 0 : i32
    return %arg0, %c0_i32 : i32, i32
  }
  func.func @transform_2(%arg0: i32) -> (i32, i32) {
    %c0_i32 = arith.constant 0 : i32
    %c0_i32_0 = arith.constant 0 : i32
    %c0_i32_1 = arith.constant 0 : i32
    return %c0_i32, %c0_i32_0 : i32, i32
  }
  func.func @transform_3(%arg0: i32) -> (i32, i32) {
    %c0_i32 = arith.constant 0 : i32
    %c0_i32_0 = arith.constant 0 : i32
    return %arg0, %c0_i32 : i32, i32
  }
  func.func @transform_4(%arg0: i32) -> (i32, i32) {
    %c0_i32 = arith.constant 0 : i32
    %c0_i32_0 = arith.constant 0 : i32
    return %arg0, %c0_i32 : i32, i32
  }
  func.func @transform_5(%arg0: i32) -> (i32, i32) {
    %c0_i32 = arith.constant 0 : i32
    %c0_i32_0 = arith.constant 0 : i32
    return %arg0, %c0_i32 : i32, i32
  }
}

</mosaic_0001>

<llo_original>
// kernel: tpu_custom_call.1
$region0: #{tpu_custom_call.1}
  #allocation0 [shape = 'u32[]', space=smem, size = 0x4, offset = 0x4, fixed_abs, tag = 'smem constant byte address 0x4 - core index']
  #allocation1 [shape = 'u32[72,128]{1,0:T(1,128)}', space=vmem, size = 0x9000, scoped, tag = 'internal scratch']
  %s0 = inlined_call_operand.hbm [shape: s32[16,128], index: 0, kind: input, shape index: {}]
  %s1 = inlined_call_operand.hbm [shape: s32[16,128], index: 1, kind: input, shape index: {}]
  %s2 = inlined_call_operand.hbm [shape: s32[8,128], index: 2, kind: input, shape index: {}]
  %s3 = inlined_call_operand.hbm [shape: f32[16,128], index: 3, kind: output, shape index: {0}]
  %s4 = inlined_call_operand.hbm [shape: f32[16,128], index: 4, kind: output, shape index: {1}]
  %s5 = inlined_call_operand.hbm [shape: s32[16,128], index: 5, kind: output, shape index: {2}]
  %6 = xla_tuple %s3, %s4, %s5
  %s7 = sld [smem:[#allocation0]]
  $region73: #{tpu_custom_call.1} parent=0
    _
  %s9 = ssub.s32 1, %s7
  %s10 = scalar_select 0, %s9, %s7
  $region1: #{tpu_custom_call.1} parent=0
    #allocation2 [shape = 'u8[8192]{0}', space=vmem, size = 0x2000, scoped, tag = 'input window, operand 0']
    #allocation3 [shape = 's32[2]{0}', space=sflag, size = 0x8, scoped, tag = 'scoped memory for tpu_custom_call.1']
    #allocation4 [shape = 's32[2]{0}', space=sflag, size = 0x8, scoped, tag = 'scoped memory for tpu_custom_call.1']
    #allocation5 [shape = 'u8[8192]{0}', space=vmem, size = 0x2000, scoped, tag = 'input window, operand 1']
    #allocation6 [shape = 's32[2]{0}', space=sflag, size = 0x8, scoped, tag = 'scoped memory for tpu_custom_call.1']
    #allocation7 [shape = 'u8[4096]{0}', space=vmem, size = 0x1000, scoped, tag = 'input window, operand 2, single buffered']
    #allocation8 [shape = 'u8[8192]{0}', space=vmem, size = 0x2000, scoped, tag = 'output window, operand 0']
    #allocation9 [shape = 'u8[8192]{0}', space=vmem, size = 0x2000, scoped, tag = 'output window, operand 1']
    #allocation10 [shape = 's32[2]{0}', space=sflag, size = 0x8, scoped, tag = 'scoped memory for tpu_custom_call.1']
    #allocation11 [shape = 'u8[8192]{0}', space=vmem, size = 0x2000, scoped, tag = 'output window, operand 2']
    %11 = vsyncpa [#allocation3], 0
    %s12 = scalar_lea.sflag [#allocation3], 1
    %13 = vsyncpa %s12, 0
    %14 = vsyncpa [#allocation6], 0
    %s15 = scalar_lea.sflag [#allocation6], 1
    %16 = vsyncpa %s15, 0
    %17 = vsyncpa [#allocation4], 0
    %s18 = scalar_lea.sflag [#allocation4], 1
    %19 = vsyncpa %s18, 0
    %20 = vsyncpa [#allocation10], 0
    %s21 = scalar_lea.sflag [#allocation10], 1
    %22 = vsyncpa %s21, 0
    loop: start=0, step=1, limit=4
    $region2: #{tpu_custom_call.1} parent=1 // loop_pre_header
      _
    $region3: #{tpu_custom_call.1} parent=1 // loop_header
      %s24 = sphi 0, %s28
      %p25 = scmp.ge.s32.totalorder %s24, 4
      %s34 = sphi 0, %s36
      %s37 = sphi 0, %s34
      %s38 = sphi 0, %s37
      %s54 = sphi 0, %s38
      %s60 = sphi 0, %s62
      %s63 = sphi 0, %s60
      %s64 = sphi 0, %s63
      %s80 = sphi 0, %s64
      %s84 = sphi 0, %s84
      %s86 = sphi 0, %s84
      %s87 = sphi 0, %s86
      %s101 = sphi 0, %s87
      %s107 = sphi 0, %s109
      %s110 = sphi 0, %s107
      %s111 = sphi 0, %s110
      %s127 = sphi 0, %s111
      %s133 = sphi 0, %s135
      %s136 = sphi 0, %s133
      %s137 = sphi 0, %s136
      %s153 = sphi 0, %s137
      %s159 = sphi 0, %s161
      %s162 = sphi 0, %s159
      %s163 = sphi 0, %s162
      %s179 = sphi 0, %s163
    $region4: #{tpu_custom_call.1} parent=1 // loop_header_branch
      %27 = sbr.rel (%p25) target = $region8
    $region5: #{tpu_custom_call.1} parent=1 // loop_body
      %s29 = ssub.s32 %s24, 1
      %s30 = ssub.s32 %s24, 2
      %s31 = sadd.s32 %s24, 1
      %s32 = ssub.s32 %s24, %s31
      %p33 = scmp.eq.s32.totalorder %s32, 0
      %s35 = sadd.s32 %s34, 1
      %s36 = scalar_select %p33, %s34, %s35
      %p39 = pneg %p33
      %p40 = scmp.eq.s32.totalorder %s24, 1
      %p41 = por %p39, %p40
      %p42 = scmp.ne.s32.totalorder %s34, %s37
      %p43 = scmp.eq.s32.totalorder %s24, 0
      %p44 = por %p42, %p43
      %p45 = scmp.ne.s32.totalorder %s34, %s37
      %p46 = scmp.eq.s32.totalorder %s29, 1
      %p47 = por %p45, %p46
      %p48 = scmp.ne.s32.totalorder %s37, %s38
      %p49 = scmp.eq.s32.totalorder %s29, 0
      %p50 = por %p48, %p49
      %p51 = scmp.ne.s32.totalorder %s37, %s38
      %p52 = scmp.eq.s32.totalorder %s30, 1
      %p53 = por %p51, %p52
      %p55 = scmp.ne.s32.totalorder %s38, %s54
      %p56 = scmp.eq.s32.totalorder %s30, 0
      %p57 = por %p55, %p56
      %s58 = ssub.s32 %s24, %s31
      %p59 = scmp.eq.s32.totalorder %s58, 0
      %s61 = sadd.s32 %s60, 1
      %s62 = scalar_select %p59, %s60, %s61
      %p65 = pneg %p59
      %p66 = scmp.eq.s32.totalorder %s24, 1
      %p67 = por %p65, %p66
      %p68 = scmp.ne.s32.totalorder %s60, %s63
      %p69 = scmp.eq.s32.totalorder %s24, 0
      %p70 = por %p68, %p69
      %p71 = scmp.ne.s32.totalorder %s60, %s63
      %p72 = scmp.eq.s32.totalorder %s29, 1
      %p73 = por %p71, %p72
      %p74 = scmp.ne.s32.totalorder %s63, %s64
      %p75 = scmp.eq.s32.totalorder %s29, 0
      %p76 = por %p74, %p75
      %p77 = scmp.ne.s32.totalorder %s63, %s64
      %p78 = scmp.eq.s32.totalorder %s30, 1
      %p79 = por %p77, %p78
      %p81 = scmp.ne.s32.totalorder %s64, %s80
      %p82 = scmp.eq.s32.totalorder %s30, 0
      %p83 = por %p81, %p82
      %s85 = sadd.s32 %s84, 1
      %p88 = scmp.eq.s32.totalorder %s24, 1
      %p89 = scmp.ne.s32.totalorder %s84, %s86
      %p90 = scmp.eq.s32.totalorder %s24, 0
      %p91 = por %p89, %p90
      %p92 = scmp.ne.s32.totalorder %s84, %s86
      %p93 = scmp.eq.s32.totalorder %s29, 1
      %p94 = por %p92, %p93
      %p95 = scmp.ne.s32.totalorder %s86, %s87
      %p96 = scmp.eq.s32.totalorder %s29, 0
      %p97 = por %p95, %p96
      %p98 = scmp.ne.s32.totalorder %s86, %s87
      %p99 = scmp.eq.s32.totalorder %s30, 1
      %p100 = por %p98, %p99
      %p102 = scmp.ne.s32.totalorder %s87, %s101
      %p103 = scmp.eq.s32.totalorder %s30, 0
      %p104 = por %p102, %p103
      %s105 = ssub.s32 %s24, %s31
      %p106 = scmp.eq.s32.totalorder %s105, 0
      %s108 = sadd.s32 %s107, 1
      %s109 = scalar_select %p106, %s107, %s108
      %p112 = pneg %p106
      %p113 = scmp.eq.s32.totalorder %s24, 1
      %p114 = por %p112, %p113
      %p115 = scmp.ne.s32.totalorder %s107, %s110
      %p116 = scmp.eq.s32.totalorder %s24, 0
      %p117 = por %p115, %p116
      %p118 = scmp.ne.s32.totalorder %s107, %s110
      %p119 = scmp.eq.s32.totalorder %s29, 1
      %p120 = por %p118, %p119
      %p121 = scmp.ne.s32.totalorder %s110, %s111
      %p122 = scmp.eq.s32.totalorder %s29, 0
      %p123 = por %p121, %p122
      %p124 = scmp.ne.s32.totalorder %s110, %s111
      %p125 = scmp.eq.s32.totalorder %s30, 1
      %p126 = por %p124, %p125
      %p128 = scmp.ne.s32.totalorder %s111, %s127
      %p129 = scmp.eq.s32.totalorder %s30, 0
      %p130 = por %p128, %p129
      %s131 = ssub.s32 %s24, %s31
      %p132 = scmp.eq.s32.totalorder %s131, 0
      %s134 = sadd.s32 %s133, 1
      %s135 = scalar_select %p132, %s133, %s134
      %p138 = pneg %p132
      %p139 = scmp.eq.s32.totalorder %s24, 1
      %p140 = por %p138, %p139
      %p141 = scmp.ne.s32.totalorder %s133, %s136
      %p142 = scmp.eq.s32.totalorder %s24, 0
      %p143 = por %p141, %p142
      %p144 = scmp.ne.s32.totalorder %s133, %s136
      %p145 = scmp.eq.s32.totalorder %s29, 1
      %p146 = por %p144, %p145
      %p147 = scmp.ne.s32.totalorder %s136, %s137
      %p148 = scmp.eq.s32.totalorder %s29, 0
      %p149 = por %p147, %p148
      %p150 = scmp.ne.s32.totalorder %s136, %s137
      %p151 = scmp.eq.s32.totalorder %s30, 1
      %p152 = por %p150, %p151
      %p154 = scmp.ne.s32.totalorder %s137, %s153
      %p155 = scmp.eq.s32.totalorder %s30, 0
      %p156 = por %p154, %p155
      %s157 = ssub.s32 %s24, %s31
      %p158 = scmp.eq.s32.totalorder %s157, 0
      %s160 = sadd.s32 %s159, 1
      %s161 = scalar_select %p158, %s159, %s160
      %p164 = pneg %p158
      %p165 = scmp.eq.s32.totalorder %s24, 1
      %p166 = por %p164, %p165
      %p167 = scmp.ne.s32.totalorder %s159, %s162
      %p168 = scmp.eq.s32.totalorder %s24, 0
      %p169 = por %p167, %p168
      %p170 = scmp.ne.s32.totalorder %s159, %s162
      %p171 = scmp.eq.s32.totalorder %s29, 1
      %p172 = por %p170, %p171
      %p173 = scmp.ne.s32.totalorder %s162, %s163
      %p174 = scmp.eq.s32.totalorder %s29, 0
      %p175 = por %p173, %p174
      %p176 = scmp.ne.s32.totalorder %s162, %s163
      %p177 = scmp.eq.s32.totalorder %s30, 1
      %p178 = por %p176, %p177
      %p180 = scmp.ne.s32.totalorder %s163, %s179
      %p181 = scmp.eq.s32.totalorder %s30, 0
      %p182 = por %p180, %p181
      %p183 = scmp.le.s32.totalorder 1, %s24
      %p184 = scmp.lt.s32.totalorder %s24, 3
      %p185 = pnand %p183, %p184
      %p186 = pneg %p185
      // Predicated region
      $region9: #{tpu_custom_call.1} parent=5 // pred_check
        _
      $region10: #{tpu_custom_call.1} parent=5 // pred_check_branch
        %188 = sbr.rel (%p185) target = $region12
      $region11: #{tpu_custom_call.1} parent=5 // pred_region
        %s189 = ssub.s32 %s24, 1
        // Predicated region
        $region13: #{tpu_custom_call.1} parent=11 // pred_check
          %p190 = pneg %p97
        $region14: #{tpu_custom_call.1} parent=11 // pred_check_branch
          %192 = sbr.rel (%p190) target = $region16
        $region15: #{tpu_custom_call.1} parent=11 // pred_region
          %194 = vsyncadd [#allocation6], 0
          %s196 = sshll.u32 %s2, 4
          %s197 = int_to_ptr.hbm [resolvable:$true] %s196
          %s198 = sshll.u32 [#allocation7], 4
          %s199 = int_to_ptr.vmem [resolvable:$true] %s198
          %201 = dma.hbm_to_vmem [thread:$0]  %s197, 128, %s199, [#allocation6]
        $region16: #{tpu_custom_call.1} parent=11 // pred_fallthru
          _
      $region12: #{tpu_custom_call.1} parent=5 // pred_fallthru
        _
      %p202 = scmp.lt.s32.totalorder %s24, 2
      // Predicated region
      $region17: #{tpu_custom_call.1} parent=5 // pred_check
        %p203 = pneg %p202
      $region18: #{tpu_custom_call.1} parent=5 // pred_check_branch
        %205 = sbr.rel (%p203) target = $region20
      $region19: #{tpu_custom_call.1} parent=5 // pred_region
        // Predicated region
        $region21: #{tpu_custom_call.1} parent=19 // pred_check
          %p206 = pneg %p44
        $region22: #{tpu_custom_call.1} parent=19 // pred_check_branch
          %208 = sbr.rel (%p206) target = $region24
        $region23: #{tpu_custom_call.1} parent=19 // pred_region
          %s209 = sand.u32 %s34, 1
          %s210 = scalar_lea.sflag [#allocation3], %s209
          %s211 = sand.u32 %s34, 1
          %s212 = smul.addr %s211, 8
          %s213 = scalar_lea.vmem [#allocation2], %s212
          %215 = vsyncadd %s210, 0
          %s216 = smul.addr %s24, 8
          %s217 = scalar_lea.hbm %s0, %s216
          %s219 = sshll.u32 %s217, 4
          %s220 = int_to_ptr.hbm [resolvable:$true] %s219
          %s221 = sshll.u32 %s213, 4
          %s222 = int_to_ptr.vmem [resolvable:$true] %s221
          %224 = dma.hbm_to_vmem [thread:$0]  %s220, 128, %s222, %s210
        $region24: #{tpu_custom_call.1} parent=19 // pred_fallthru
          _
        // Predicated region
        $region25: #{tpu_custom_call.1} parent=19 // pred_check
          %p225 = pneg %p70
        $region26: #{tpu_custom_call.1} parent=19 // pred_check_branch
          %227 = sbr.rel (%p225) target = $region28
        $region27: #{tpu_custom_call.1} parent=19 // pred_region
          %s228 = sand.u32 %s24, 1
          %s229 = scalar_lea.sflag [#allocation6], %s228
          %s230 = sand.u32 %s60, 1
          %s231 = smul.addr %s230, 8
          %s232 = scalar_lea.vmem [#allocation5], %s231
          %234 = vsyncadd %s229, 0
          %s235 = smul.addr %s24, 8
          %s236 = scalar_lea.hbm %s1, %s235
          %s238 = sshll.u32 %s236, 4
          %s239 = int_to_ptr.hbm [resolvable:$true] %s238
          %s240 = sshll.u32 %s232, 4
          %s241 = int_to_ptr.vmem [resolvable:$true] %s240
          %243 = dma.hbm_to_vmem [thread:$0]  %s239, 128, %s241, %s229
        $region28: #{tpu_custom_call.1} parent=19 // pred_fallthru
          _
      $region20: #{tpu_custom_call.1} parent=5 // pred_fallthru
        _
      %p244 = scmp.le.s32.totalorder 1, %s24
      %p245 = scmp.lt.s32.totalorder %s24, 3
      %p246 = pnand %p244, %p245
      %p247 = pneg %p246
      // Predicated region
      $region29: #{tpu_custom_call.1} parent=5 // pred_check
        _
      $region30: #{tpu_custom_call.1} parent=5 // pred_check_branch
        %249 = sbr.rel (%p246) target = $region32
      $region31: #{tpu_custom_call.1} parent=5 // pred_region
        %s250 = ssub.s32 %s24, 1
        %s251 = sand.u32 %s37, 1
        %s252 = scalar_lea.sflag [#allocation3], %s251
        %s253 = sand.u32 %s37, 1
        %s254 = smul.addr %s253, 8
        %s255 = scalar_lea.vmem [#allocation2], %s254
        // Predicated region
        $region33: #{tpu_custom_call.1} parent=31 // pred_check
          %p256 = pneg %p50
        $region34: #{tpu_custom_call.1} parent=31 // pred_check_branch
          %258 = sbr.rel (%p256) target = $region36
        $region35: #{tpu_custom_call.1} parent=31 // pred_region
          %260 = dma.done %s252, 128
        $region36: #{tpu_custom_call.1} parent=31 // pred_fallthru
          _
        %s261 = sand.u32 %s29, 1
        %s262 = scalar_lea.sflag [#allocation6], %s261
        %s263 = sand.u32 %s63, 1
        %s264 = smul.addr %s263, 8
        %s265 = scalar_lea.vmem [#allocation5], %s264
        // Predicated region
        $region37: #{tpu_custom_call.1} parent=31 // pred_check
          %p266 = pneg %p76
        $region38: #{tpu_custom_call.1} parent=31 // pred_check_branch
          %268 = sbr.rel (%p266) target = $region40
        $region39: #{tpu_custom_call.1} parent=31 // pred_region
          %270 = dma.done %s262, 128
        $region40: #{tpu_custom_call.1} parent=31 // pred_fallthru
          _
        // Predicated region
        $region41: #{tpu_custom_call.1} parent=31 // pred_check
          %p271 = pneg %p97
        $region42: #{tpu_custom_call.1} parent=31 // pred_check_branch
          %273 = sbr.rel (%p271) target = $region44
        $region43: #{tpu_custom_call.1} parent=31 // pred_region
          %275 = dma.done [#allocation6], 128
        $region44: #{tpu_custom_call.1} parent=31 // pred_fallthru
          _
        %s276 = sand.u32 %s37, 1
        %s277 = scalar_lea.sflag [#allocation3], %s276
        %s278 = sand.u32 %s37, 1
        %s279 = smul.addr %s278, 8
        %s280 = scalar_lea.vmem [#allocation2], %s279
        %p281 = pneg %p50
        %p282 = pneg %p47
        %s283 = sand.u32 %s29, 1
        %s284 = scalar_lea.sflag [#allocation6], %s283
        %s285 = sand.u32 %s63, 1
        %s286 = smul.addr %s285, 8
        %s287 = scalar_lea.vmem [#allocation5], %s286
        %p288 = pneg %p76
        %p289 = pneg %p73
        %p290 = pneg %p97
        %p291 = pneg %p94
        %p292 = pneg %p123
        %p293 = pneg %p120
        %s294 = sand.u32 %s110, 1
        %s295 = scalar_lea.sflag [#allocation4], %s294
        %s296 = sand.u32 %s110, 1
        %s297 = smul.addr %s296, 8
        %s298 = scalar_lea.vmem [#allocation8], %s297
        %p299 = pneg %p149
        %p300 = pneg %p146
        %s301 = sand.u32 %s29, 1
        %s302 = scalar_lea.sflag [#allocation10], %s301
        %s303 = sand.u32 %s136, 1
        %s304 = smul.addr %s303, 8
        %s305 = scalar_lea.vmem [#allocation9], %s304
        %p306 = pneg %p175
        %p307 = pneg %p172
        %s308 = sand.u32 %s29, 1
        %s309 = scalar_lea.sflag [#allocation10], %s308
        %s310 = sand.u32 %s162, 1
        %s311 = smul.addr %s310, 8
        %s312 = scalar_lea.vmem [#allocation11], %s311
        %v313 = vld [vmem:[#allocation7] sm:$0xff]
        %v314 = vand.u32 %v313, 8388607
        %v315 = vcvt.s32.f32 %v314
        %v316 = vmul.f32 %v315, 1.1920929e-07
        %v317 = vmul.f32 %v316, 1000.0
        %v318 = vfloor.f32 %v317
        %v319 = vcvt.f32.s32.to.zero.pseudo %v318
        %vm320 = vcmp.lt.s32.totalorder %v319, 999
        %v321 = vsel %vm320, %v319, 999
        %322 = vst [vmem:[%s312] sm:$0xff] %v321
        %v323 = vld [vmem:[%s255] sm:$0xff]
        %v324 = vld [vmem:[%s265] sm:$0xff]
        %v325 = vand.u32 %v323, 8388607
        %v326 = vcvt.s32.f32 %v325
        %v327 = vadd.f32 %v326, 0.5
        %v328 = vmul.f32 %v327, 1.1920929e-07
        %v329 = vand.u32 %v324, 8388607
        %v330 = vcvt.s32.f32 %v329
        %v331 = vmul.f32 %v330, 1.1920929e-07
        %v332 = vlog2.pop %v328
        %v333 = vmul.f32 %v332, 0.6931472
        %v334 = vmul.f32 %v333, -2.0
        %v335 = vrsqrt.pop %v334
        %v336 = vmul.f32 %v335, %v334
        %v337 = vmul.f32 %v336, %v335
        %v338 = vmul.f32 0.5, %v337
        %v339 = vsub.f32 1.5, %v338
        %v340 = vmul.f32 %v335, %v339
        %v341 = vmul.f32 %v334, %v340
        %vm342 = vcmp.eq.f32.partialorder %v334, inf
        %v343 = vsel %vm342, %v334, %v341
        %vm344 = vcmp.eq.f32.partialorder %v334, 0.0
        %v345 = vand.u32 %v334, 2147483648
        %v346 = vsel %vm344, %v345, %v343
        %v347 = vmul.f32 %v331, 6.2831855
        %v348 = vand.u32 2147483647, %v347
        %vm349 = vcmp.le.f32.partialorder %v348, 0.7853982
        %vm350 = vcmp.lt.s32.totalorder %v347, 0
        %v351 = vand.u32 %v347, 2139095040
        %v352 = vshrl.u32 %v351, 23
        %v353 = vsub.s32 %v352, 127
        %v354 = vand.u32 2147483647, %v347
        %v355 = vand.u32 %v354, 8388607
        %v356 = vor.u32 %v355, 8388608
        %v357 = vsub.s32 0, %v356
        %v358 = vadd.s32 %v353, 1
        %vm359 = vcmp.gt.s32.totalorder %v358, 0
        %v360 = vsel %vm359, %v358, 0
        %v361 = vshrl.u32 %v360, 5
        %v362 = vand.u32 %v360, 31
        %v363 = vsub.s32 32, %v362
        %v364 = vshrl.u32 683565275, %v363
        %v365 = vshll.u32 683565275, %v362
        %v366 = vshrl.u32 2475754826, %v363
        %v367 = vor.u32 %v365, %v366
        %v368 = vshll.u32 2475754826, %v362
        %v369 = vshrl.u32 2131351028, %v363
        %v370 = vor.u32 %v368, %v369
        %v371 = vshll.u32 2131351028, %v362
        %v372 = vshrl.u32 2102212464, %v363
        %v373 = vor.u32 %v371, %v372
        %v374 = vshll.u32 2102212464, %v362
        %v375 = vshrl.u32 920167782, %v363
        %v376 = vor.u32 %v374, %v375
        %v377 = vshll.u32 920167782, %v362
        %v378 = vshrl.u32 1326507024, %v363
        %v379 = vor.u32 %v377, %v378
        %vm380 = vcmp.lt.s32.totalorder %v361, 1
        %vm381 = vcmp.lt.s32.totalorder %v361, 2
        %vm382 = vcmp.lt.s32.totalorder %v361, 3
        %vm383 = vcmp.lt.s32.totalorder %v361, 4
        %v384 = vsel %vm380, %v364, %v367
        %v385 = vsel %vm383, %v373, 2102212464
        %v386 = vsel %vm382, %v370, %v385
        %v387 = vsel %vm381, %v384, %v386
        %v388 = vsel %vm380, %v367, %v370
        %v389 = vsel %vm383, %v376, 920167782
        %v390 = vsel %vm382, %v373, %v389
        %v391 = vsel %vm381, %v388, %v390
        %v392 = vsel %vm380, %v370, %v373
        %v393 = vsel %vm383, %v379, 1326507024
        %v394 = vsel %vm382, %v376, %v393
        %v395 = vsel %vm381, %v392, %v394
        %v396 = vshll.u32 %v356, 8
        %v397 = vand.u32 %v396, 65535
        %v398 = vshrl.u32 %v396, 16
        %v399 = vand.u32 %v395, 65535
        %v400 = vshrl.u32 %v395, 16
        %v401 = vmul.u32 %v397, %v399
        %v402 = vmul.u32 %v397, %v400
        %v403 = vmul.u32 %v398, %v399
        %v404 = vmul.u32 %v398, %v400
        %v405 = vshll.u32 %v402, 16
        %v406 = vshrl.u32 %v402, 16
        %v407 = vshll.u32 %v403, 16
        %v408 = vshrl.u32 %v403, 16
        %vm409 = vc.u32 %v401, %v405
        %v410 = vsel %vm409, 1, 0
        %v411 = vadd.s32 %v401, %v405
        %v412 = vadd.s32 %v404, %v410
        %vm413 = vc.u32 %v411, %v407
        %v414 = vsel %vm413, 1, 0
        %v415 = vadd.s32 %v411, %v407
        %v416 = vadd.s32 %v412, %v414
        %v417 = vadd.s32 %v416, %v406
        %v418 = vadd.s32 %v417, %v408
        %v419 = vand.u32 %v396, 65535
        %v420 = vshrl.u32 %v396, 16
        %v421 = vand.u32 %v391, 65535
        %v422 = vshrl.u32 %v391, 16
        %v423 = vmul.u32 %v419, %v421
        %v424 = vmul.u32 %v419, %v422
        %v425 = vmul.u32 %v420, %v421
        %v426 = vmul.u32 %v420, %v422
        %v427 = vshll.u32 %v424, 16
        %v428 = vshrl.u32 %v424, 16
        %v429 = vshll.u32 %v425, 16
        %v430 = vshrl.u32 %v425, 16
        %vm431 = vc.u32 %v423, %v427
        %v432 = vsel %vm431, 1, 0
        %v433 = vadd.s32 %v423, %v427
        %v434 = vadd.s32 %v426, %v432
        %vm435 = vc.u32 %v433, %v429
        %v436 = vsel %vm435, 1, 0
        %v437 = vadd.s32 %v433, %v429
        %v438 = vadd.s32 %v434, %v436
        %v439 = vadd.s32 %v438, %v428
        %v440 = vadd.s32 %v439, %v430
        %v441 = vmul.u32 %v396, %v387
        %v442 = vadd.s32 %v418, %v437
        %vm443 = vc.u32 %v418, %v437
        %v444 = vadd.s32 %v440, 1
        %v445 = vsel %vm443, %v444, %v440
        %v446 = vadd.s32 %v441, %v445
        %v447 = vadd.s32 %v446, 536870912
        %v448 = vshrl.u32 %v447, 30
        %v449 = vshll.u32 %v448, 30
        %v450 = vsub.s32 %v446, %v449
        %vm451 = vcmp.lt.s32.totalorder %v450, 0
        %v452 = vsub.s32 0, %v450
        %v453 = vsel %vm451, %v452, %v450
        %v454 = vclz %v453
        %v455 = vsub.s32 %v454, 2
        %vm456 = vcmp.gt.s32.totalorder 0, %v455
        %v457 = vsel %vm456, 0, %v455
        %v458 = vsub.s32 32, %v457
        %v459 = vshll.u32 %v450, %v457
        %v460 = vshrl.u32 %v442, %v458
        %v461 = vor.u32 %v459, %v460
        %v462 = vsub.s32 4294967266, %v457
        %v463 = vadd.s32 %v462, 127
        %v464 = vshll.u32 %v463, 23
        %v465 = vor.u32 4788187, %v464
        %v466 = vand.u32 2147483647, %v465
        %v468 = vcvt.s32.f32 %v461
        %v469 = vmul.f32 %v468, %v466
        %v470 = vxor.u32 %v469, 2147483648
        %v471 = vsel %vm350, %v470, %v469
        %v472 = vsub.s32 4, %v448
        %v473 = vsel %vm350, %v472, %v448
        %v474 = vsel %vm349, %v347, %v471
        %v475 = vsel %vm349, 0, %v473
        %v476 = vmul.f32 %v474, %v474
        %v477 = vmul.f32 %v476, -0.001358992
        %v478 = vadd.f32 %v477, 0.041655596
        %v479 = vmul.f32 %v476, %v478
        %v480 = vadd.f32 %v479, -0.4999988
        %v481 = vmul.f32 %v476, %v480
        %v482 = vadd.f32 1.0, %v481
        %v483 = vmul.f32 %v474, %v474
        %v484 = vmul.f32 %v483, -0.00019511016
        %v485 = vadd.f32 %v484, 0.008332121
        %v486 = vmul.f32 %v483, %v485
        %v487 = vadd.f32 %v486, -0.16666654
        %v488 = vmul.f32 %v483, %v487
        %v489 = vadd.f32 %v488, 1.0
        %v490 = vmul.f32 %v489, %v474
        %vm491 = vweird.f32 %v347
        %v492 = vand.u32 %v475, 3
        %vm493 = vcmp.lt.s32.totalorder %v492, 2
        %vm494 = vcmp.eq.s32.totalorder %v492, 0
        %v495 = vxor.u32 %v490, 2147483648
        %v496 = vsel %vm494, %v482, %v495
        %vm497 = vcmp.eq.s32.totalorder %v492, 2
        %v498 = vxor.u32 %v482, 2147483648
        %v499 = vsel %vm497, %v498, %v490
        %v500 = vsel %vm493, %v496, %v499
        %v501 = vsel %vm491, nan, %v500
        %v502 = vmul.f32 %v346, %v501
        %v503 = vand.u32 2147483647, %v347
        %vm504 = vcmp.le.f32.partialorder %v503, 0.7853982
        %vm505 = vcmp.lt.s32.totalorder %v347, 0
        %v506 = vand.u32 %v347, 2139095040
        %v507 = vshrl.u32 %v506, 23
        %v508 = vsub.s32 %v507, 127
        %v509 = vand.u32 2147483647, %v347
        %v510 = vand.u32 %v509, 8388607
        %v511 = vor.u32 %v510, 8388608
        %v512 = vsub.s32 0, %v511
        %v513 = vadd.s32 %v508, 1
        %vm514 = vcmp.gt.s32.totalorder %v513, 0
        %v515 = vsel %vm514, %v513, 0
        %v516 = vshrl.u32 %v515, 5
        %v517 = vand.u32 %v515, 31
        %v518 = vsub.s32 32, %v517
        %v519 = vshrl.u32 683565275, %v518
        %v520 = vshll.u32 683565275, %v517
        %v521 = vshrl.u32 2475754826, %v518
        %v522 = vor.u32 %v520, %v521
        %v523 = vshll.u32 2475754826, %v517
        %v524 = vshrl.u32 2131351028, %v518
        %v525 = vor.u32 %v523, %v524
        %v526 = vshll.u32 2131351028, %v517
        %v527 = vshrl.u32 2102212464, %v518
        %v528 = vor.u32 %v526, %v527
        %v529 = vshll.u32 2102212464, %v517
        %v530 = vshrl.u32 920167782, %v518
        %v531 = vor.u32 %v529, %v530
        %v532 = vshll.u32 920167782, %v517
        %v533 = vshrl.u32 1326507024, %v518
        %v534 = vor.u32 %v532, %v533
        %vm535 = vcmp.lt.s32.totalorder %v516, 1
        %vm536 = vcmp.lt.s32.totalorder %v516, 2
        %vm537 = vcmp.lt.s32.totalorder %v516, 3
        %vm538 = vcmp.lt.s32.totalorder %v516, 4
        %v539 = vsel %vm535, %v519, %v522
        %v540 = vsel %vm538, %v528, 2102212464
        %v541 = vsel %vm537, %v525, %v540
        %v542 = vsel %vm536, %v539, %v541
        %v543 = vsel %vm535, %v522, %v525
        %v544 = vsel %vm538, %v531, 920167782
        %v545 = vsel %vm537, %v528, %v544
        %v546 = vsel %vm536, %v543, %v545
        %v547 = vsel %vm535, %v525, %v528
        %v548 = vsel %vm538, %v534, 1326507024
        %v549 = vsel %vm537, %v531, %v548
        %v550 = vsel %vm536, %v547, %v549
        %v551 = vshll.u32 %v511, 8
        %v552 = vand.u32 %v551, 65535
        %v553 = vshrl.u32 %v551, 16
        %v554 = vand.u32 %v550, 65535
        %v555 = vshrl.u32 %v550, 16
        %v556 = vmul.u32 %v552, %v554
        %v557 = vmul.u32 %v552, %v555
        %v558 = vmul.u32 %v553, %v554
        %v559 = vmul.u32 %v553, %v555
        %v560 = vshll.u32 %v557, 16
        %v561 = vshrl.u32 %v557, 16
        %v562 = vshll.u32 %v558, 16
        %v563 = vshrl.u32 %v558, 16
        %vm564 = vc.u32 %v556, %v560
        %v565 = vsel %vm564, 1, 0
        %v566 = vadd.s32 %v556, %v560
        %v567 = vadd.s32 %v559, %v565
        %vm568 = vc.u32 %v566, %v562
        %v569 = vsel %vm568, 1, 0
        %v570 = vadd.s32 %v566, %v562
        %v571 = vadd.s32 %v567, %v569
        %v572 = vadd.s32 %v571, %v561
        %v573 = vadd.s32 %v572, %v563
        %v574 = vand.u32 %v551, 65535
        %v575 = vshrl.u32 %v551, 16
        %v576 = vand.u32 %v546, 65535
        %v577 = vshrl.u32 %v546, 16
        %v578 = vmul.u32 %v574, %v576
        %v579 = vmul.u32 %v574, %v577
        %v580 = vmul.u32 %v575, %v576
        %v581 = vmul.u32 %v575, %v577
        %v582 = vshll.u32 %v579, 16
        %v583 = vshrl.u32 %v579, 16
        %v584 = vshll.u32 %v580, 16
        %v585 = vshrl.u32 %v580, 16
        %vm586 = vc.u32 %v578, %v582
        %v587 = vsel %vm586, 1, 0
        %v588 = vadd.s32 %v578, %v582
        %v589 = vadd.s32 %v581, %v587
        %vm590 = vc.u32 %v588, %v584
        %v591 = vsel %vm590, 1, 0
        %v592 = vadd.s32 %v588, %v584
        %v593 = vadd.s32 %v589, %v591
        %v594 = vadd.s32 %v593, %v583
        %v595 = vadd.s32 %v594, %v585
        %v596 = vmul.u32 %v551, %v542
        %v597 = vadd.s32 %v573, %v592
        %vm598 = vc.u32 %v573, %v592
        %v599 = vadd.s32 %v595, 1
        %v600 = vsel %vm598, %v599, %v595
        %v601 = vadd.s32 %v596, %v600
        %v602 = vadd.s32 %v601, 536870912
        %v603 = vshrl.u32 %v602, 30
        %v604 = vshll.u32 %v603, 30
        %v605 = vsub.s32 %v601, %v604
        %vm606 = vcmp.lt.s32.totalorder %v605, 0
        %v607 = vsub.s32 0, %v605
        %v608 = vsel %vm606, %v607, %v605
        %v609 = vclz %v608
        %v610 = vsub.s32 %v609, 2
        %vm611 = vcmp.gt.s32.totalorder 0, %v610
        %v612 = vsel %vm611, 0, %v610
        %v613 = vsub.s32 32, %v612
        %v614 = vshll.u32 %v605, %v612
        %v615 = vshrl.u32 %v597, %v613
        %v616 = vor.u32 %v614, %v615
        %v617 = vsub.s32 4294967266, %v612
        %v618 = vadd.s32 %v617, 127
        %v619 = vshll.u32 %v618, 23
        %v620 = vor.u32 4788187, %v619
        %v621 = vand.u32 2147483647, %v620
        %v623 = vcvt.s32.f32 %v616
        %v624 = vmul.f32 %v623, %v621
        %v625 = vxor.u32 %v624, 2147483648
        %v626 = vsel %vm505, %v625, %v624
        %v627 = vsub.s32 4, %v603
        %v628 = vsel %vm505, %v627, %v603
        %v629 = vsel %vm504, %v347, %v626
        %v630 = vsel %vm504, 0, %v628
        %v631 = vmul.f32 %v629, %v629
        %v632 = vmul.f32 %v631, -0.001358992
        %v633 = vadd.f32 %v632, 0.041655596
        %v634 = vmul.f32 %v631, %v633
        %v635 = vadd.f32 %v634, -0.4999988
        %v636 = vmul.f32 %v631, %v635
        %v637 = vadd.f32 1.0, %v636
        %v638 = vmul.f32 %v629, %v629
        %v639 = vmul.f32 %v638, -0.00019511016
        %v640 = vadd.f32 %v639, 0.008332121
        %v641 = vmul.f32 %v638, %v640
        %v642 = vadd.f32 %v641, -0.16666654
        %v643 = vmul.f32 %v638, %v642
        %v644 = vadd.f32 %v643, 1.0
        %v645 = vmul.f32 %v644, %v629
        %vm646 = vweird.f32 %v347
        %v647 = vadd.s32 %v630, 3
        %v648 = vand.u32 %v647, 3
        %vm649 = vcmp.lt.s32.totalorder %v648, 2
        %vm650 = vcmp.eq.s32.totalorder %v648, 0
        %v651 = vxor.u32 %v645, 2147483648
        %v652 = vsel %vm650, %v637, %v651
        %vm653 = vcmp.eq.s32.totalorder %v648, 2
        %v654 = vxor.u32 %v637, 2147483648
        %v655 = vsel %vm653, %v654, %v645
        %v656 = vsel %vm649, %v652, %v655
        %v657 = vsel %vm646, nan, %v656
        %v658 = vmul.f32 %v346, %v657
        %659 = vst [vmem:[%s298] sm:$0xff] %v502
        %660 = vst [vmem:[%s305] sm:$0xff] %v658
        %s661 = sand.u32 %s110, 1
        %s662 = scalar_lea.sflag [#allocation4], %s661
        %s663 = sand.u32 %s110, 1
        %s664 = smul.addr %s663, 8
        %s665 = scalar_lea.vmem [#allocation8], %s664
        %s666 = sand.u32 %s29, 1
        %s667 = scalar_lea.sflag [#allocation10], %s666
        %s668 = sand.u32 %s136, 1
        %s669 = smul.addr %s668, 8
        %s670 = scalar_lea.vmem [#allocation9], %s669
        %s671 = sand.u32 %s29, 1
        %s672 = scalar_lea.sflag [#allocation10], %s671
        %s673 = sand.u32 %s162, 1
        %s674 = smul.addr %s673, 8
        %s675 = scalar_lea.vmem [#allocation11], %s674
        // Predicated region
        $region45: #{tpu_custom_call.1} parent=31 // pred_check
          %p676 = pneg %p120
        $region46: #{tpu_custom_call.1} parent=31 // pred_check_branch
          %678 = sbr.rel (%p676) target = $region48
        $region47: #{tpu_custom_call.1} parent=31 // pred_region
          %680 = vsyncadd %s662, 0
          %s681 = smul.addr %s29, 8
          %s682 = scalar_lea.hbm %s3, %s681
          %s684 = sshll.u32 %s665, 4
          %s685 = int_to_ptr.vmem [resolvable:$true] %s684
          %s686 = sshll.u32 %s682, 4
          %s687 = int_to_ptr.hbm [resolvable:$true] %s686
          %689 = dma.vmem_to_hbm [thread:$0]  %s685, 128, %s687, %s662
        $region48: #{tpu_custom_call.1} parent=31 // pred_fallthru
          _
        // Predicated region
        $region49: #{tpu_custom_call.1} parent=31 // pred_check
          %p690 = pneg %p146
        $region50: #{tpu_custom_call.1} parent=31 // pred_check_branch
          %692 = sbr.rel (%p690) target = $region52
        $region51: #{tpu_custom_call.1} parent=31 // pred_region
          %694 = vsyncadd %s667, 0
          %s695 = smul.addr %s29, 8
          %s696 = scalar_lea.hbm %s4, %s695
          %s698 = sshll.u32 %s670, 4
          %s699 = int_to_ptr.vmem [resolvable:$true] %s698
          %s700 = sshll.u32 %s696, 4
          %s701 = int_to_ptr.hbm [resolvable:$true] %s700
          %703 = dma.vmem_to_hbm [thread:$0]  %s699, 128, %s701, %s667
        $region52: #{tpu_custom_call.1} parent=31 // pred_fallthru
          _
        // Predicated region
        $region53: #{tpu_custom_call.1} parent=31 // pred_check
          %p704 = pneg %p172
        $region54: #{tpu_custom_call.1} parent=31 // pred_check_branch
          %706 = sbr.rel (%p704) target = $region56
        $region55: #{tpu_custom_call.1} parent=31 // pred_region
          %708 = vsyncadd %s672, 0
          %s709 = smul.addr %s29, 8
          %s710 = scalar_lea.hbm %s5, %s709
          %s712 = sshll.u32 %s675, 4
          %s713 = int_to_ptr.vmem [resolvable:$true] %s712
          %s714 = sshll.u32 %s710, 4
          %s715 = int_to_ptr.hbm [resolvable:$true] %s714
          %717 = dma.vmem_to_hbm [thread:$0]  %s713, 128, %s715, %s672
        $region56: #{tpu_custom_call.1} parent=31 // pred_fallthru
          _
      $region32: #{tpu_custom_call.1} parent=5 // pred_fallthru
        _
      %p718 = scmp.le.s32.totalorder 2, %s24
      // Predicated region
      $region57: #{tpu_custom_call.1} parent=5 // pred_check
        %p719 = pneg %p718
      $region58: #{tpu_custom_call.1} parent=5 // pred_check_branch
        %721 = sbr.rel (%p719) target = $region60
      $region59: #{tpu_custom_call.1} parent=5 // pred_region
        %s722 = ssub.s32 %s24, 2
        // Predicated region
        $region61: #{tpu_custom_call.1} parent=59 // pred_check
          %p723 = pneg %p126
        $region62: #{tpu_custom_call.1} parent=59 // pred_check_branch
          %725 = sbr.rel (%p723) target = $region64
        $region63: #{tpu_custom_call.1} parent=59 // pred_region
          %s726 = sand.u32 %s111, 1
          %s727 = scalar_lea.sflag [#allocation4], %s726
          %s728 = sand.u32 %s111, 1
          %s729 = smul.addr %s728, 8
          %s730 = scalar_lea.vmem [#allocation8], %s729
          %732 = dma.done %s727, 128
        $region64: #{tpu_custom_call.1} parent=59 // pred_fallthru
          _
        // Predicated region
        $region65: #{tpu_custom_call.1} parent=59 // pred_check
          %p733 = pneg %p152
        $region66: #{tpu_custom_call.1} parent=59 // pred_check_branch
          %735 = sbr.rel (%p733) target = $region68
        $region67: #{tpu_custom_call.1} parent=59 // pred_region
          %s736 = sand.u32 %s30, 1
          %s737 = scalar_lea.sflag [#allocation10], %s736
          %s738 = sand.u32 %s137, 1
          %s739 = smul.addr %s738, 8
          %s740 = scalar_lea.vmem [#allocation9], %s739
          %742 = dma.done %s737, 128
        $region68: #{tpu_custom_call.1} parent=59 // pred_fallthru
          _
        // Predicated region
        $region69: #{tpu_custom_call.1} parent=59 // pred_check
          %p743 = pneg %p178
        $region70: #{tpu_custom_call.1} parent=59 // pred_check_branch
          %745 = sbr.rel (%p743) target = $region72
        $region71: #{tpu_custom_call.1} parent=59 // pred_region
          %s746 = sand.u32 %s30, 1
          %s747 = scalar_lea.sflag [#allocation10], %s746
          %s748 = sand.u32 %s163, 1
          %s749 = smul.addr %s748, 8
          %s750 = scalar_lea.vmem [#allocation11], %s749
          %752 = dma.done %s747, 128
        $region72: #{tpu_custom_call.1} parent=59 // pred_fallthru
          _
      $region60: #{tpu_custom_call.1} parent=5 // pred_fallthru
        _
    $region6: #{tpu_custom_call.1} parent=1 // loop_footer
      %s28 = sadd.s32 1, %s24
    $region7: #{tpu_custom_call.1} parent=1 // loop_footer_branch
      %23 = sbr.rel target = $region3
    $region8: #{tpu_custom_call.1} parent=1 // loop_exit
      _
    %753 = vsyncpa [#allocation3], 1
    %s754 = scalar_lea.sflag [#allocation3], 1
    %755 = vsyncpa %s754, 1
    %756 = vsyncpa [#allocation6], 1
    %s757 = scalar_lea.sflag [#allocation6], 1
    %758 = vsyncpa %s757, 1
    %759 = vsyncpa [#allocation4], 1
    %s760 = scalar_lea.sflag [#allocation4], 1
    %761 = vsyncpa %s760, 1
    %762 = vsyncpa [#allocation10], 1
    %s763 = scalar_lea.sflag [#allocation10], 1
    %764 = vsyncpa %s763, 1

</llo_original>
